<compile_context>
chip_gen: v6e
topology: v6e:2x2x1
jax: 0.10.0
libtpu: 0.0.40
codegen_flags: <defaults>
</compile_context>

<pallas_src>
import functools

import jax
import jax.numpy as jnp
from jax.experimental import pallas as pl
from jax.experimental.pallas import tpu as pltpu


def _round_up(x, m):
    return ((x + m - 1) // m) * m


def _softplus(x):
    # Matches torch.nn.Softplus (beta=1, threshold=20):
    #   x > 20 -> x, else log1p(exp(x))   (overflow-safe form)
    return jnp.where(x > 20.0, x, jnp.log1p(jnp.exp(jnp.minimum(x, 20.0))))


def adapter_kernel(x_ref, w1_ref, b1_ref, w2_ref, b2_ref, o_ref):
    # x / W1 / W2 arrive in the compute dtype (bf16); accumulate in f32 on MXU.
    x = x_ref[...]
    h = jnp.dot(x, w1_ref[...], preferred_element_type=jnp.float32)
    h = _softplus(h + b1_ref[...])
    h = h.astype(w2_ref.dtype)  # back to bf16 for the second MXU pass
    y = jnp.dot(h, w2_ref[...], preferred_element_type=jnp.float32)
    y = _softplus(y + b2_ref[...])
    o_ref[...] = y.astype(o_ref.dtype)


@functools.partial(jax.jit, static_argnames=("tile_m", "compute_dtype"))
def adapter_forward(x, w1, b1, w2, b2, *, tile_m=512, compute_dtype=jnp.bfloat16):
    """x: [..., dim]; w1/w2: (dim, dim) stored as (in, out); b1/b2: (dim,) or (1, dim)."""
    orig_shape = x.shape
    dim = orig_shape[-1]
    out_dtype = x.dtype

    x2d = x.reshape(-1, dim)
    rows = x2d.shape[0]

    # Lane-dense feature axis; sublane-aligned, large row tile.
    dim_p = _round_up(dim, 128)
    tile_m_eff = min(tile_m, _round_up(rows, 8))   # don't over-pad tiny inputs
    rows_p = _round_up(rows, tile_m_eff)
    grid = (rows_p // tile_m_eff,)                 # "parallel" -> megacore shards it

    cbytes = jnp.dtype(compute_dtype).itemsize
    obytes = jnp.dtype(out_dtype).itemsize

    # Pad + cast once in the wrapper (not per grid step in the kernel).
    xp = jnp.pad(x2d.astype(compute_dtype),
                 ((0, rows_p - rows), (0, dim_p - dim)))
    w1p = jnp.pad(w1.astype(compute_dtype), ((0, dim_p - dim), (0, dim_p - dim)))
    w2p = jnp.pad(w2.astype(compute_dtype), ((0, dim_p - dim), (0, dim_p - dim)))
    b1p = jnp.pad(b1.reshape(1, dim).astype(jnp.float32), ((0, 0), (0, dim_p - dim)))
    b2p = jnp.pad(b2.reshape(1, dim).astype(jnp.float32), ((0, 0), (0, dim_p - dim)))

    # Advisory cost hint for XLA's scheduler around the custom call.
    cost = pl.CostEstimate(
        flops=4 * rows_p * dim_p * dim_p,                    # two (M,K)x(K,N) matmuls
        transcendentals=2 * rows_p * dim_p,                  # two softplus passes
        bytes_accessed=rows_p * dim_p * (cbytes + obytes) + 2 * dim_p * dim_p * cbytes,
    )

    # Explicit VMEM budget: double-buffered x/out tiles, resident (but still
    # double-buffered) weights, biases, plus f32 intermediates + slack.
    vmem_est = (
        2 * tile_m_eff * dim_p * cbytes          # x tiles
        + 2 * tile_m_eff * dim_p * obytes        # out tiles
        + 2 * 2 * dim_p * dim_p * cbytes         # W1 / W2
        + 2 * 2 * dim_p * 4                      # biases
        + 3 * tile_m_eff * dim_p * 4             # f32 intermediates
    )
    vmem_limit = int(min(max(2 * vmem_est, 32 << 20), 64 << 20))  # valid on v7x (64 MiB)

    out = pl.pallas_call(
        adapter_kernel,
        out_shape=jax.ShapeDtypeStruct((rows_p, dim_p), out_dtype),
        grid_spec=pltpu.PrefetchScalarGridSpec(
            num_scalar_prefetch=0,
            grid=grid,
            in_specs=[
                pl.BlockSpec((tile_m_eff, dim_p), lambda i: (i, 0)),  # x rows
                pl.BlockSpec((dim_p, dim_p), lambda i: (0, 0)),       # W1 (resident)
                pl.BlockSpec((1, dim_p), lambda i: (0, 0)),           # b1
                pl.BlockSpec((dim_p, dim_p), lambda i: (0, 0)),       # W2 (resident)
                pl.BlockSpec((1, dim_p), lambda i: (0, 0)),           # b2
            ],
            out_specs=pl.BlockSpec((tile_m_eff, dim_p), lambda i: (i, 0)),
        ),
        compiler_params=pltpu.CompilerParams(
            dimension_semantics=("parallel",),
            vmem_limit_bytes=vmem_limit,
        ),
        cost_estimate=cost,
    )(xp, w1p, b1p, w2p, b2p)

    return out[:rows, :dim].reshape(orig_shape)


if __name__ == "__main__":
    key = jax.random.PRNGKey(0)
    batch, seq, dim = 2, 8, 32  # small shapes consistent with Adapter(dim)

    k_x, k_w1, k_b1, k_w2, k_b2 = jax.random.split(key, 5)
    x = jax.random.normal(k_x, (batch, seq, dim), dtype=jnp.float32)

    # Deterministic parameter init (uniform like PyTorch Linear default range).
    bound = 1.0 / (dim ** 0.5)
    w1 = jax.random.uniform(k_w1, (dim, dim), jnp.float32, -bound, bound)  # (in, out)
    b1 = jax.random.uniform(k_b1, (1, dim), jnp.float32, -bound, bound)
    w2 = jax.random.uniform(k_w2, (dim, dim), jnp.float32, -bound, bound)  # (in, out)
    b2 = jax.random.uniform(k_b2, (1, dim), jnp.float32, -bound, bound)

    out = adapter_forward(x, w1, b1, w2, b2)
    jax.block_until_ready(out)
    assert out.shape == x.shape

    # Reference 1: same precision recipe as the kernel (bf16 operands, f32 accum).
    def ref_bf16(xv):
        xb = xv.astype(jnp.bfloat16)
        w1b = w1.astype(jnp.bfloat16)
        w2b = w2.astype(jnp.bfloat16)
        h = jax.nn.softplus(
            jnp.dot(xb, w1b, preferred_element_type=jnp.float32) + b1)
        h = h.astype(jnp.bfloat16)
        return jax.nn.softplus(
            jnp.dot(h, w2b, preferred_element_type=jnp.float32) + b2)

    # Reference 2: full f32 (the exact PyTorch-module math).
    def ref_f32(xv):
        h = jax.nn.softplus(xv @ w1 + b1[0])
        return jax.nn.softplus(h @ w2 + b2[0])

    exp_bf16 = ref_bf16(x)
    exp_f32 = ref_f32(x)
    assert jnp.allclose(out, exp_bf16, atol=2e-2, rtol=2e-2), "mismatch vs bf16 reference"
    assert jnp.allclose(out, exp_f32, atol=6e-2, rtol=6e-2), "mismatch vs f32 reference"

    print("KERNEL_OK")
</pallas_src>

<mosaic_0001>
module attributes {stable_mosaic.version = 11 : i64} {
  func.func @adapter_kernel(%arg0: i32, %arg1: memref<16x128xbf16, #tpu.memory_space<vmem>>, %arg2: memref<128x128xbf16, #tpu.memory_space<vmem>>, %arg3: memref<1x128xf32, #tpu.memory_space<vmem>>, %arg4: memref<128x128xbf16, #tpu.memory_space<vmem>>, %arg5: memref<1x128xf32, #tpu.memory_space<vmem>>, %arg6: memref<16x128xf32, #tpu.memory_space<vmem>>) attributes {dimension_semantics = [#tpu.dimension_semantics<parallel>], iteration_bounds = array<i64: 1>, scalar_prefetch = 0 : i64, scratch_operands = 0 : i64, tpu.core_type = #tpu.core_type<tc>, window_params = [{transform_indices = @transform_0, window_bounds = array<i64: 16, 128>}, {pipeline_mode = #tpu.pipeline_mode<synchronous>, transform_indices = @transform_1, window_bounds = array<i64: 128, 128>}, {pipeline_mode = #tpu.pipeline_mode<synchronous>, transform_indices = @transform_2, window_bounds = array<i64: 1, 128>}, {pipeline_mode = #tpu.pipeline_mode<synchronous>, transform_indices = @transform_3, window_bounds = array<i64: 128, 128>}, {pipeline_mode = #tpu.pipeline_mode<synchronous>, transform_indices = @transform_4, window_bounds = array<i64: 1, 128>}, {transform_indices = @transform_5, window_bounds = array<i64: 16, 128>}]} {
    %c0 = arith.constant 0 : index
    %c0_0 = arith.constant 0 : index
    %0 = vector.load %arg1[%c0, %c0_0] : memref<16x128xbf16, #tpu.memory_space<vmem>>, vector<16x128xbf16>
    %c0_1 = arith.constant 0 : index
    %c0_2 = arith.constant 0 : index
    %1 = vector.load %arg2[%c0_1, %c0_2] : memref<128x128xbf16, #tpu.memory_space<vmem>>, vector<128x128xbf16>
    %cst = arith.constant dense<0.000000e+00> : vector<16x128xf32>
    %2 = tpu.matmul %0, %1, %cst {dimension_numbers = #tpu.dot_dimension_numbers<[1], [0], [0], [1], [0, 0, 1, 1], [], []>} : vector<16x128xbf16>, vector<128x128xbf16>, vector<16x128xf32> -> vector<16x128xf32>
    %c0_3 = arith.constant 0 : index
    %c0_4 = arith.constant 0 : index
    %3 = vector.load %arg3[%c0_3, %c0_4] : memref<1x128xf32, #tpu.memory_space<vmem>>, vector<1x128xf32>
    %4 = vector.broadcast %3 : vector<1x128xf32> to vector<16x128xf32>
    %5 = arith.addf %2, %4 : vector<16x128xf32>
    %cst_5 = arith.constant 2.000000e+01 : f32
    %6 = vector.broadcast %cst_5 : f32 to vector<16x128xf32>
    %7 = arith.cmpf ogt, %5, %6 : vector<16x128xf32>
    %cst_6 = arith.constant 2.000000e+01 : f32
    %8 = vector.broadcast %cst_6 : f32 to vector<16x128xf32>
    %9 = arith.minimumf %5, %8 : vector<16x128xf32>
    %10 = math.exp %9 : vector<16x128xf32>
    %11 = math.log1p %10 : vector<16x128xf32>
    %12 = arith.select %7, %5, %11 : vector<16x128xi1>, vector<16x128xf32>
    %13 = arith.truncf %12 : vector<16x128xf32> to vector<16x128xbf16>
    %c0_7 = arith.constant 0 : index
    %c0_8 = arith.constant 0 : index
    %14 = vector.load %arg4[%c0_7, %c0_8] : memref<128x128xbf16, #tpu.memory_space<vmem>>, vector<128x128xbf16>
    %cst_9 = arith.constant dense<0.000000e+00> : vector<16x128xf32>
    %15 = tpu.matmul %13, %14, %cst_9 {dimension_numbers = #tpu.dot_dimension_numbers<[1], [0], [0], [1], [0, 0, 1, 1], [], []>} : vector<16x128xbf16>, vector<128x128xbf16>, vector<16x128xf32> -> vector<16x128xf32>
    %c0_10 = arith.constant 0 : index
    %c0_11 = arith.constant 0 : index
    %16 = vector.load %arg5[%c0_10, %c0_11] : memref<1x128xf32, #tpu.memory_space<vmem>>, vector<1x128xf32>
    %17 = vector.broadcast %16 : vector<1x128xf32> to vector<16x128xf32>
    %18 = arith.addf %15, %17 : vector<16x128xf32>
    %cst_12 = arith.constant 2.000000e+01 : f32
    %19 = vector.broadcast %cst_12 : f32 to vector<16x128xf32>
    %20 = arith.cmpf ogt, %18, %19 : vector<16x128xf32>
    %cst_13 = arith.constant 2.000000e+01 : f32
    %21 = vector.broadcast %cst_13 : f32 to vector<16x128xf32>
    %22 = arith.minimumf %18, %21 : vector<16x128xf32>
    %23 = math.exp %22 : vector<16x128xf32>
    %24 = math.log1p %23 : vector<16x128xf32>
    %25 = arith.select %20, %18, %24 : vector<16x128xi1>, vector<16x128xf32>
    %c0_14 = arith.constant 0 : index
    %c0_15 = arith.constant 0 : index
    %26 = vector.load %arg6[%c0_14, %c0_15] : memref<16x128xf32, #tpu.memory_space<vmem>>, vector<16x128xf32>
    tpu.vector_store %arg6[%c0_14, %c0_15], %25 {strides = array<i32>} : memref<16x128xf32, #tpu.memory_space<vmem>>, vector<16x128xf32>,
    return
  }
  func.func @transform_0(%arg0: i32) -> (i32, i32) {
    %c0_i32 = arith.constant 0 : i32
    %c0_i32_0 = arith.constant 0 : i32
    return %arg0, %c0_i32 : i32, i32
  }
  func.func @transform_1(%arg0: i32) -> (i32, i32) {
    %c0_i32 = arith.constant 0 : i32
    %c0_i32_0 = arith.constant 0 : i32
    %c0_i32_1 = arith.constant 0 : i32
    return %c0_i32, %c0_i32_0 : i32, i32
  }
  func.func @transform_2(%arg0: i32) -> (i32, i32) {
    %c0_i32 = arith.constant 0 : i32
    %c0_i32_0 = arith.constant 0 : i32
    %c0_i32_1 = arith.constant 0 : i32
    return %c0_i32, %c0_i32_0 : i32, i32
  }
  func.func @transform_3(%arg0: i32) -> (i32, i32) {
    %c0_i32 = arith.constant 0 : i32
    %c0_i32_0 = arith.constant 0 : i32
    %c0_i32_1 = arith.constant 0 : i32
    return %c0_i32, %c0_i32_0 : i32, i32
  }
  func.func @transform_4(%arg0: i32) -> (i32, i32) {
    %c0_i32 = arith.constant 0 : i32
    %c0_i32_0 = arith.constant 0 : i32
    %c0_i32_1 = arith.constant 0 : i32
    return %c0_i32, %c0_i32_0 : i32, i32
  }
  func.func @transform_5(%arg0: i32) -> (i32, i32) {
    %c0_i32 = arith.constant 0 : i32
    %c0_i32_0 = arith.constant 0 : i32
    return %arg0, %c0_i32 : i32, i32
  }
}

</mosaic_0001>

<llo_original>
// kernel: adapter_forward.1
$region0: #{adapter_forward.1}
  #allocation0 [shape = 'u32[]', space=smem, size = 0x4, offset = 0x4, fixed_abs, tag = 'smem constant byte address 0x4 - core index']
  #allocation1 [shape = 'u32[144,128]{1,0:T(1,128)}', space=vmem, size = 0x12000, scoped, tag = 'internal scratch']
  %s0 = inlined_call_operand.vmem [shape: bf16[16,128], index: 0, kind: input, shape index: {}]
  %s1 = inlined_call_operand.vmem [shape: bf16[128,128], index: 1, kind: input, shape index: {}]
  %s2 = inlined_call_operand.vmem [shape: f32[1,128], index: 2, kind: input, shape index: {}]
  %s3 = inlined_call_operand.vmem [shape: bf16[128,128], index: 3, kind: input, shape index: {}]
  %s4 = inlined_call_operand.vmem [shape: f32[1,128], index: 4, kind: input, shape index: {}]
  %s5 = inlined_call_operand.vmem [shape: f32[16,128], index: 5, kind: output, shape index: {}]
  %s6 = sld [smem:[#allocation0]]
  $region30: #{adapter_forward.1} parent=0
    _
  %s8 = ssub.s32 1, %s6
  %s9 = scalar_select 0, %s8, %s6
  // Predicated region
  $region2: #{adapter_forward.1} parent=0 // pred_check
    _
  $region3: #{adapter_forward.1} parent=0 // pred_check_branch
    %11 = sbr.rel (0) target = $region5
  $region4: #{adapter_forward.1} parent=0 // pred_region
    _
  $region5: #{adapter_forward.1} parent=0 // pred_fallthru
    _
  // Predicated region
  $region6: #{adapter_forward.1} parent=0 // pred_check
    _
  $region7: #{adapter_forward.1} parent=0 // pred_check_branch
    %13 = sbr.rel (0) target = $region9
  $region8: #{adapter_forward.1} parent=0 // pred_region
    _
  $region9: #{adapter_forward.1} parent=0 // pred_fallthru
    _
  // Predicated region
  $region10: #{adapter_forward.1} parent=0 // pred_check
    _
  $region11: #{adapter_forward.1} parent=0 // pred_check_branch
    %15 = sbr.rel (0) target = $region13
  $region12: #{adapter_forward.1} parent=0 // pred_region
    _
  $region13: #{adapter_forward.1} parent=0 // pred_fallthru
    _
  // Predicated region
  $region14: #{adapter_forward.1} parent=0 // pred_check
    _
  $region15: #{adapter_forward.1} parent=0 // pred_check_branch
    %17 = sbr.rel (0) target = $region17
  $region16: #{adapter_forward.1} parent=0 // pred_region
    _
  $region17: #{adapter_forward.1} parent=0 // pred_fallthru
    _
  // Predicated region
  $region18: #{adapter_forward.1} parent=0 // pred_check
    _
  $region19: #{adapter_forward.1} parent=0 // pred_check_branch
    %19 = sbr.rel (0) target = $region21
  $region20: #{adapter_forward.1} parent=0 // pred_region
    _
  $region21: #{adapter_forward.1} parent=0 // pred_fallthru
    _
  %v21 = vld [vmem:[%s0] sm:$0xf]
  %v22 = vld [vmem:[%s0 + $0x4] sm:$0xf]
  %v23 = vld [vmem:[%s1] sm:$0xf]
  %v24 = vld [vmem:[%s1 + $0x4] sm:$0xf]
  %v25 = vld [vmem:[%s1 + $0x8] sm:$0xf]
  %v26 = vld [vmem:[%s1 + $0xc] sm:$0xf]
  %v27 = vld [vmem:[%s1 + $0x10] sm:$0xf]
  %v28 = vld [vmem:[%s1 + $0x14] sm:$0xf]
  %v29 = vld [vmem:[%s1 + $0x18] sm:$0xf]
  %v30 = vld [vmem:[%s1 + $0x1c] sm:$0xf]
  %v31 = vld [vmem:[%s1 + $0x20] sm:$0xf]
  %v32 = vld [vmem:[%s1 + $0x24] sm:$0xf]
  %v33 = vld [vmem:[%s1 + $0x28] sm:$0xf]
  %v34 = vld [vmem:[%s1 + $0x2c] sm:$0xf]
  %v35 = vld [vmem:[%s1 + $0x30] sm:$0xf]
  %v36 = vld [vmem:[%s1 + $0x34] sm:$0xf]
  %v37 = vld [vmem:[%s1 + $0x38] sm:$0xf]
  %v38 = vld [vmem:[%s1 + $0x3c] sm:$0xf]
  %v39 = vld [vmem:[%s2] sm:$0x1]
  %v41 = vlaneseq
  %v42 = vshrl.u32 %v41, 7
  %v43 = vsub.s32 0, %v42
  %v44 = vrot.slane %v39, %v43
  %v48 = vunpack.c.l.b16 %v21
  %v49 = vunpack.c.l.b16 %v22
  %v50 = vpack.c.b16 %v49, %v48
  %v68 = vunpack.c.l.b16 %v23
  %v69 = vunpack.c.l.b16 %v24
  %v70 = vunpack.c.l.b16 %v25
  %v71 = vunpack.c.l.b16 %v26
  %v72 = vunpack.c.l.b16 %v27
  %v73 = vunpack.c.l.b16 %v28
  %v74 = vunpack.c.l.b16 %v29
  %v75 = vunpack.c.l.b16 %v30
  %v76 = vunpack.c.l.b16 %v31
  %v77 = vunpack.c.l.b16 %v32
  %v78 = vunpack.c.l.b16 %v33
  %v79 = vunpack.c.l.b16 %v34
  %v80 = vunpack.c.l.b16 %v35
  %v81 = vunpack.c.l.b16 %v36
  %v82 = vunpack.c.l.b16 %v37
  %v83 = vunpack.c.l.b16 %v38
  %v84 = vpack.c.b16 %v69, %v68
  %v85 = vpack.c.b16 %v71, %v70
  %v86 = vpack.c.b16 %v73, %v72
  %v87 = vpack.c.b16 %v75, %v74
  %v88 = vpack.c.b16 %v77, %v76
  %v89 = vpack.c.b16 %v79, %v78
  %v90 = vpack.c.b16 %v81, %v80
  %v91 = vpack.c.b16 %v83, %v82
  %100 = vmatprep.subr.bf16.mxu0 0
  %101 = vmatpush1.bf16.msra.mxu0 %v91
  %102 = vmatprep.subr.bf16.mxu0 0
  %103 = vmatpush1.bf16.msra.mxu0 %v90
  %104 = vmatprep.subr.bf16.mxu0 0
  %105 = vmatpush1.bf16.msra.mxu0 %v89
  %106 = vmatprep.subr.bf16.mxu0 0
  %107 = vmatpush1.bf16.msra.mxu0 %v88
  %108 = vmatprep.subr.bf16.mxu0 0
  %109 = vmatpush1.bf16.msra.mxu0 %v87
  %110 = vmatprep.subr.bf16.mxu0 0
  %111 = vmatpush1.bf16.msra.mxu0 %v86
  %112 = vmatprep.subr.bf16.mxu0 0
  %113 = vmatpush1.bf16.msra.mxu0 %v85
  %114 = vmatprep.subr.bf16.mxu0 0
  %115 = vmatpush1.bf16.msra.mxu0 %v84
  %116 = vmatprep.subr.bf16.mxu0 0
  %117 = vmatpush2.bf16.msra.mxu0 0
  %118 = vmatprep.subr.bf16.mxu0 0
  %119 = vmatpush2.bf16.msra.mxu0 0
  %120 = vmatprep.subr.bf16.mxu0 0
  %121 = vmatpush2.bf16.msra.mxu0 0
  %122 = vmatprep.subr.bf16.mxu0 0
  %123 = vmatpush2.bf16.msra.mxu0 0
  %124 = vmatprep.subr.bf16.mxu0 0
  %125 = vmatpush2.bf16.msra.mxu0 0
  %126 = vmatprep.subr.bf16.mxu0 0
  %127 = vmatpush2.bf16.msra.mxu0 0
  %128 = vmatprep.subr.bf16.mxu0 0
  %129 = vmatpush2.bf16.msra.mxu0 0
  %130 = vmatprep.subr.bf16.mxu0 0
  %131 = vmatpush2.bf16.msra.mxu0 0
  %132 = vmatprep.mubr.bf16.mxu0 0
  %133 = vmatmul.mubr.bf16.gmra.mxu0 %v50
  %v134 = vpop.f32.mrf.mxu0
  %v135 = vadd.f32 %v44, %v134
  %v136 = vpop.f32.mrf.mxu0
  %v137 = vpop.f32.mrf.mxu0
  %v138 = vadd.f32 %v44, %v137
  %v139 = vpop.f32.mrf.mxu0
  %140 = vdwg.mxu0
  %vm141 = vcmp.gt.f32.partialorder %v135, 20.0
  %vm142 = vcmp.gt.f32.partialorder %v138, 20.0
  %v143 = vmin.f32 %v135, 20.0
  %v144 = vmin.f32 %v138, 20.0
  %v145 = vmul.f32 %v143, 1.442695
  %v146 = vpow.pop %v145
  %v147 = vmul.f32 %v144, 1.442695
  %v148 = vpow.pop %v147
  %v149 = vadd.f32 %v146, 1.0
  %v150 = vlog2.pop %v149
  %v151 = vmul.f32 %v150, 0.6931472
  %v152 = vmul.f32 -0.5, %v146
  %v153 = vadd.f32 %v152, 1.0
  %v154 = vmul.f32 %v153, %v146
  %v155 = vand.u32 2147483647, %v146
  %vm156 = vcmp.lt.f32.partialorder %v155, 0.0004427343
  %v157 = vsel %vm156, %v154, %v151
  %v158 = vadd.f32 %v148, 1.0
  %v159 = vlog2.pop %v158
  %v160 = vmul.f32 %v159, 0.6931472
  %v161 = vmul.f32 -0.5, %v148
  %v162 = vadd.f32 %v161, 1.0
  %v163 = vmul.f32 %v162, %v148
  %v164 = vand.u32 2147483647, %v148
  %vm165 = vcmp.lt.f32.partialorder %v164, 0.0004427343
  %v166 = vsel %vm165, %v163, %v160
  %v167 = vsel %vm141, %v135, %v157
  %v168 = vsel %vm142, %v138, %v166
  %v169 = vpack.c.bf16 %v168, %v167
  %v170 = vld [vmem:[%s3] sm:$0xf]
  %v171 = vld [vmem:[%s3 + $0x4] sm:$0xf]
  %v172 = vld [vmem:[%s3 + $0x8] sm:$0xf]
  %v173 = vld [vmem:[%s3 + $0xc] sm:$0xf]
  %v174 = vld [vmem:[%s3 + $0x10] sm:$0xf]
  %v175 = vld [vmem:[%s3 + $0x14] sm:$0xf]
  %v176 = vld [vmem:[%s3 + $0x18] sm:$0xf]
  %v177 = vld [vmem:[%s3 + $0x1c] sm:$0xf]
  %v178 = vld [vmem:[%s3 + $0x20] sm:$0xf]
  %v179 = vld [vmem:[%s3 + $0x24] sm:$0xf]
  %v180 = vld [vmem:[%s3 + $0x28] sm:$0xf]
  %v181 = vld [vmem:[%s3 + $0x2c] sm:$0xf]
  %v182 = vld [vmem:[%s3 + $0x30] sm:$0xf]
  %v183 = vld [vmem:[%s3 + $0x34] sm:$0xf]
  %v184 = vld [vmem:[%s3 + $0x38] sm:$0xf]
  %v185 = vld [vmem:[%s3 + $0x3c] sm:$0xf]
  %v186 = vld [vmem:[%s4] sm:$0x1]
  %v188 = vlaneseq
  %v189 = vshrl.u32 %v188, 7
  %v190 = vsub.s32 0, %v189
  %v191 = vrot.slane %v186, %v190
  %v209 = vunpack.c.l.b16 %v170
  %v210 = vunpack.c.l.b16 %v171
  %v211 = vunpack.c.l.b16 %v172
  %v212 = vunpack.c.l.b16 %v173
  %v213 = vunpack.c.l.b16 %v174
  %v214 = vunpack.c.l.b16 %v175
  %v215 = vunpack.c.l.b16 %v176
  %v216 = vunpack.c.l.b16 %v177
  %v217 = vunpack.c.l.b16 %v178
  %v218 = vunpack.c.l.b16 %v179
  %v219 = vunpack.c.l.b16 %v180
  %v220 = vunpack.c.l.b16 %v181
  %v221 = vunpack.c.l.b16 %v182
  %v222 = vunpack.c.l.b16 %v183
  %v223 = vunpack.c.l.b16 %v184
  %v224 = vunpack.c.l.b16 %v185
  %v225 = vpack.c.b16 %v210, %v209
  %v226 = vpack.c.b16 %v212, %v211
  %v227 = vpack.c.b16 %v214, %v213
  %v228 = vpack.c.b16 %v216, %v215
  %v229 = vpack.c.b16 %v218, %v217
  %v230 = vpack.c.b16 %v220, %v219
  %v231 = vpack.c.b16 %v222, %v221
  %v232 = vpack.c.b16 %v224, %v223
  %241 = vmatprep.subr.bf16.mxu0 0
  %242 = vmatpush1.bf16.msra.mxu0 %v232
  %243 = vmatprep.subr.bf16.mxu0 0
  %244 = vmatpush1.bf16.msra.mxu0 %v231
  %245 = vmatprep.subr.bf16.mxu0 0
  %246 = vmatpush1.bf16.msra.mxu0 %v230
  %247 = vmatprep.subr.bf16.mxu0 0
  %248 = vmatpush1.bf16.msra.mxu0 %v229
  %249 = vmatprep.subr.bf16.mxu0 0
  %250 = vmatpush1.bf16.msra.mxu0 %v228
  %251 = vmatprep.subr.bf16.mxu0 0
  %252 = vmatpush1.bf16.msra.mxu0 %v227
  %253 = vmatprep.subr.bf16.mxu0 0
  %254 = vmatpush1.bf16.msra.mxu0 %v226
  %255 = vmatprep.subr.bf16.mxu0 0
  %256 = vmatpush1.bf16.msra.mxu0 %v225
  %257 = vmatprep.subr.bf16.mxu0 0
  %258 = vmatpush2.bf16.msra.mxu0 0
  %259 = vmatprep.subr.bf16.mxu0 0
  %260 = vmatpush2.bf16.msra.mxu0 0
  %261 = vmatprep.subr.bf16.mxu0 0
  %262 = vmatpush2.bf16.msra.mxu0 0
  %263 = vmatprep.subr.bf16.mxu0 0
  %264 = vmatpush2.bf16.msra.mxu0 0
  %265 = vmatprep.subr.bf16.mxu0 0
  %266 = vmatpush2.bf16.msra.mxu0 0
  %267 = vmatprep.subr.bf16.mxu0 0
  %268 = vmatpush2.bf16.msra.mxu0 0
  %269 = vmatprep.subr.bf16.mxu0 0
  %270 = vmatpush2.bf16.msra.mxu0 0
  %271 = vmatprep.subr.bf16.mxu0 0
  %272 = vmatpush2.bf16.msra.mxu0 0
  %273 = vmatprep.mubr.bf16.mxu0 0
  %274 = vmatmul.mubr.bf16.gmra.mxu0 %v169
  %v275 = vpop.f32.mrf.mxu0
  %v276 = vadd.f32 %v191, %v275
  %v277 = vpop.f32.mrf.mxu0
  %v278 = vpop.f32.mrf.mxu0
  %v279 = vadd.f32 %v191, %v278
  %v280 = vpop.f32.mrf.mxu0
  %281 = vdwg.mxu0
  %vm282 = vcmp.gt.f32.partialorder %v276, 20.0
  %vm283 = vcmp.gt.f32.partialorder %v279, 20.0
  %v284 = vmin.f32 %v276, 20.0
  %v285 = vmin.f32 %v279, 20.0
  %v286 = vmul.f32 %v284, 1.442695
  %v287 = vpow.pop %v286
  %v288 = vmul.f32 %v285, 1.442695
  %v289 = vpow.pop %v288
  %v290 = vadd.f32 %v287, 1.0
  %v291 = vlog2.pop %v290
  %v292 = vmul.f32 %v291, 0.6931472
  %v293 = vmul.f32 -0.5, %v287
  %v294 = vadd.f32 %v293, 1.0
  %v295 = vmul.f32 %v294, %v287
  %v296 = vand.u32 2147483647, %v287
  %vm297 = vcmp.lt.f32.partialorder %v296, 0.0004427343
  %v298 = vsel %vm297, %v295, %v292
  %v299 = vadd.f32 %v289, 1.0
  %v300 = vlog2.pop %v299
  %v301 = vmul.f32 %v300, 0.6931472
  %v302 = vmul.f32 -0.5, %v289
  %v303 = vadd.f32 %v302, 1.0
  %v304 = vmul.f32 %v303, %v289
  %v305 = vand.u32 2147483647, %v289
  %vm306 = vcmp.lt.f32.partialorder %v305, 0.0004427343
  %v307 = vsel %vm306, %v304, %v301
  %v308 = vsel %vm282, %v276, %v298
  %v309 = vsel %vm283, %v279, %v307
  %310 = vst [vmem:[%s5] sm:$0xff] %v308
  %311 = vst [vmem:[%s5 + $0x8] sm:$0xff] %v309
  // Predicated region
  $region22: #{adapter_forward.1} parent=0 // pred_check
    _
  $region23: #{adapter_forward.1} parent=0 // pred_check_branch
    %313 = sbr.rel (0) target = $region25
  $region24: #{adapter_forward.1} parent=0 // pred_region
    _
  $region25: #{adapter_forward.1} parent=0 // pred_fallthru
    _
  // Predicated region
  $region26: #{adapter_forward.1} parent=0 // pred_check
    _
  $region27: #{adapter_forward.1} parent=0 // pred_check_branch
    %315 = sbr.rel (0) target = $region29
  $region28: #{adapter_forward.1} parent=0 // pred_region
    _
  $region29: #{adapter_forward.1} parent=0 // pred_fallthru
    _

</llo_original>
